<compile_context>
chip_gen: v7x
topology: tpu7x:2x2x1
jax: 0.10.0
libtpu: 0.0.40
codegen_flags: <defaults>
</compile_context>

<pallas_src>
import jax
import jax.numpy as jnp
from jax import lax
from jax.experimental import pallas as pl
from jax.experimental.pallas import tpu as pltpu

NEG_SLOPE = 0.01  # nn.LeakyReLU() default negative_slope


def _round_up(x: int, m: int) -> int:
    return ((x + m - 1) // m) * m


def _vmem_budget_bytes() -> int:
    """~75% of per-core VMEM: ~48 MiB on v7x (64 MiB), ~96 MiB on v5e/v6e (128 MiB)."""
    try:
        cap = int(pltpu.get_tpu_info().vmem_capacity_bytes)
    except Exception:
        cap = 64 * 1024 * 1024  # conservative fallback (v7x per-core size)
    return (cap * 3) // 4


def prepare_params(weight, bias, *, compute_dtype=jnp.bfloat16):
    """One-time parameter prep (do at module init, NOT per forward call).

    weight: (out_dim, in_dim)  -- PyTorch nn.Linear layout
    bias:   (out_dim,)
    Transposes to (in_dim, out_dim), pads out_dim to a multiple of 128 (lane-dense
    output stores) and casts the weight to the MXU compute dtype. Bias stays f32.
    """
    out_dim, in_dim = weight.shape
    assert bias.shape == (out_dim,)
    n_pad = _round_up(out_dim, 128)
    w_t = jnp.asarray(weight).T.astype(compute_dtype)       # (in_dim, out_dim)
    b = jnp.asarray(bias).astype(jnp.float32)
    if n_pad != out_dim:
        w_t = jnp.pad(w_t, ((0, 0), (0, n_pad - out_dim)))  # one-time, inert zeros
        b = jnp.pad(b, (0, n_pad - out_dim))
    return {
        "w_t": w_t,                   # (in_dim, n_pad) compute_dtype
        "b": b.reshape(1, n_pad),     # (1, n_pad) f32
        "in_dim": in_dim,
        "out_dim": out_dim,
        "n_pad": n_pad,
        "compute_dtype": jnp.dtype(compute_dtype),
    }


def _fused_kernel(x_ref, w_ref, b_ref, o_ref):
    # Whole K in one block: matmul + bias + LeakyReLU, no accumulator scratch needed.
    y = jnp.dot(x_ref[...], w_ref[...], preferred_element_type=jnp.float32)
    y = y + b_ref[...]                                   # (tm, tn) + (1, tn) broadcast
    o_ref[...] = jnp.where(y > 0, y, NEG_SLOPE * y).astype(o_ref.dtype)


def myblock_forward(x, params, *, out_dtype=None):
    """y = LeakyReLU(x @ W^T + b), x: (B, in_dim)."""
    B, in_dim = x.shape
    assert in_dim == params["in_dim"]
    out_dim = params["out_dim"]
    n_pad = params["n_pad"]
    w_t, b2 = params["w_t"], params["b"]
    cdt = params["compute_dtype"]
    if out_dtype is None:
        out_dtype = x.dtype
    if x.dtype != cdt:
        # TODO(synk): produce compute_dtype activations upstream to skip this cast pass.
        x = x.astype(cdt)

    x_item = cdt.itemsize
    w_item = cdt.itemsize
    o_item = jnp.dtype(out_dtype).itemsize
    m_align = 16 if x_item == 2 else 8      # bf16 packs 16 sublanes / vreg
    vmem_budget = _vmem_budget_bytes()

    cost = pl.CostEstimate(
        flops=2 * B * in_dim * n_pad,
        bytes_accessed=(x.size * x_item + w_t.size * w_item
                        + b2.size * 4 + B * n_pad * o_item),
        transcendentals=0,
    )

    # Weight-resident if the double-buffered full weight slab fits in ~1/3 of budget.
    resident = 2 * in_dim * n_pad * w_item <= vmem_budget // 3

    if resident:
        # ---- weight-resident fast path: N/K grid collapses, weight read from HBM once
        tn = n_pad
        rem = vmem_budget - 2 * in_dim * tn * w_item - 2 * tn * 4
        per_row = 2 * in_dim * x_item + 2 * tn * o_item
        tm_cap = max(m_align, min(512, (rem // per_row) // m_align * m_align))
        tm = min(tm_cap, _round_up(B, m_align))
        if pl.cdiv(B, tm) == 1 and n_pad >= 256:
            # Keep both v7x TensorCores busy when the M axis has a single tile.
            tn = _round_up(pl.cdiv(n_pad, 2), 128)
        grid = (pl.cdiv(B, tm), pl.cdiv(n_pad, tn))

        out = pl.pallas_call(
            _fused_kernel,
            out_shape=jax.ShapeDtypeStruct((B, n_pad), out_dtype),
            grid_spec=pltpu.PrefetchScalarGridSpec(
                num_scalar_prefetch=0,
                grid=grid,
                in_specs=[
                    pl.BlockSpec((tm, in_dim), lambda i, j: (i, 0)),   # x tile
                    pl.BlockSpec((in_dim, tn), lambda i, j: (0, j)),   # resident weight
                    pl.BlockSpec((1, tn), lambda i, j: (0, j)),        # bias
                ],
                out_specs=pl.BlockSpec((tm, tn), lambda i, j: (i, j)),
            ),
            compiler_params=pltpu.CompilerParams(
                dimension_semantics=("parallel", "parallel"),
                vmem_limit_bytes=int(vmem_budget),
            ),
            cost_estimate=cost,
        )(x, w_t, b2)
    else:
        # ---- general path: K tiled (innermost, "arbitrary") with f32 accumulator ----
        tn = n_pad if n_pad <= 512 else 512        # 512 is 256-aligned for v6e/v7x MXU
        tk = in_dim if in_dim <= 1024 else 1024
        ragged_k = (in_dim % tk) != 0

        rem = vmem_budget - 2 * tk * tn * w_item - 2 * tn * 4
        per_row = 2 * tk * x_item + 2 * tn * o_item + tn * 4
        tm_cap = max(m_align, min(512, (rem // per_row) // m_align * m_align))
        tm = min(tm_cap, _round_up(B, m_align))
        grid = (pl.cdiv(B, tm), pl.cdiv(n_pad, tn), pl.cdiv(in_dim, tk))

        def tiled_kernel(x_ref, w_ref, b_ref, o_ref, acc_ref):
            k = pl.program_id(2)

            @pl.when(k == 0)
            def _init():
                acc_ref[...] = jnp.zeros_like(acc_ref)

            xv = x_ref[...]
            wv = w_ref[...]
            if ragged_k:
                # Zero the ragged K tail in-kernel (no per-call padding of x / weight).
                valid = in_dim - k * tk
                col = lax.broadcasted_iota(jnp.int32, xv.shape, 1)
                row = lax.broadcasted_iota(jnp.int32, wv.shape, 0)
                xv = jnp.where(col < valid, xv, jnp.zeros_like(xv))
                wv = jnp.where(row < valid, wv, jnp.zeros_like(wv))

            acc_ref[...] += jnp.dot(xv, wv, preferred_element_type=jnp.float32)

            @pl.when(k == pl.num_programs(2) - 1)
            def _finalize():
                y = acc_ref[...] + b_ref[...]
                o_ref[...] = jnp.where(y > 0, y, NEG_SLOPE * y).astype(o_ref.dtype)

        out = pl.pallas_call(
            tiled_kernel,
            out_shape=jax.ShapeDtypeStruct((B, n_pad), out_dtype),
            grid_spec=pltpu.PrefetchScalarGridSpec(
                num_scalar_prefetch=0,
                grid=grid,
                in_specs=[
                    pl.BlockSpec((tm, tk), lambda i, j, k: (i, k)),    # x tile
                    pl.BlockSpec((tk, tn), lambda i, j, k: (k, j)),    # weight tile
                    pl.BlockSpec((1, tn), lambda i, j, k: (0, j)),     # bias tile
                ],
                out_specs=pl.BlockSpec((tm, tn), lambda i, j, k: (i, j)),
                scratch_shapes=[pltpu.VMEM((tm, tn), jnp.float32)],
            ),
            compiler_params=pltpu.CompilerParams(
                dimension_semantics=("parallel", "parallel", "arbitrary"),
                vmem_limit_bytes=int(vmem_budget),
            ),
            cost_estimate=cost,
        )(x, w_t, b2)

    if n_pad != out_dim:
        # TODO(synk): keep the padded width end-to-end (downstream kernels) to skip this slice.
        out = out[:, :out_dim]
    return out


def reference_forward(x, w_t, b):
    y = x @ w_t + b[None, :]
    return jnp.where(y > 0, y, NEG_SLOPE * y)


if __name__ == "__main__":
    key = jax.random.PRNGKey(0)
    B, in_dim, out_dim = 16, 32, 128

    kx, kw, kb = jax.random.split(key, 3)
    x = jax.random.normal(kx, (B, in_dim), dtype=jnp.float32)
    # PyTorch nn.Linear layout: weight (out_dim, in_dim), bias (out_dim,)
    bound = 1.0 / (in_dim ** 0.5)
    weight = jax.random.uniform(kw, (out_dim, in_dim), jnp.float32, -bound, bound)
    bias = jax.random.uniform(kb, (out_dim,), jnp.float32, -bound, bound)

    params = prepare_params(weight, bias)     # one-time: transpose / pad / bf16 cast
    out = myblock_forward(x, params)
    out = jax.block_until_ready(out)

    # Reference with the same bf16 input quantization (accumulation stays f32).
    xq = x.astype(jnp.bfloat16).astype(jnp.float32)
    wq = params["w_t"][:, :out_dim].astype(jnp.float32)
    ref_q = reference_forward(xq, wq, bias)
    # Full-precision reference (looser tolerance: bf16 operand rounding).
    ref_full = reference_forward(x, weight.T, bias)

    assert out.shape == (B, out_dim)
    assert out.dtype == x.dtype
    assert jnp.allclose(out, ref_q, atol=2e-3, rtol=2e-3)
    assert jnp.allclose(out, ref_full, atol=1e-1, rtol=1e-1)
    print("KERNEL_OK")
</pallas_src>

<mosaic_0001>
module attributes {stable_mosaic.version = 11 : i64} {
  func.func @_fused_kernel(%arg0: i32, %arg1: i32, %arg2: memref<16x32xbf16, #tpu.memory_space<vmem>>, %arg3: memref<32x128xbf16, #tpu.memory_space<vmem>>, %arg4: memref<1x128xf32, #tpu.memory_space<vmem>>, %arg5: memref<16x128xf32, #tpu.memory_space<vmem>>) attributes {dimension_semantics = [#tpu.dimension_semantics<parallel>, #tpu.dimension_semantics<parallel>], iteration_bounds = array<i64: 1, 1>, scalar_prefetch = 0 : i64, scratch_operands = 0 : i64, tpu.core_type = #tpu.core_type<tc>, window_params = [{transform_indices = @transform_0, window_bounds = array<i64: 16, 32>}, {transform_indices = @transform_1, window_bounds = array<i64: 32, 128>}, {transform_indices = @transform_2, window_bounds = array<i64: 1, 128>}, {transform_indices = @transform_3, window_bounds = array<i64: 16, 128>}]} {
    %c0 = arith.constant 0 : index
    %c0_0 = arith.constant 0 : index
    %0 = vector.load %arg2[%c0, %c0_0] : memref<16x32xbf16, #tpu.memory_space<vmem>>, vector<16x32xbf16>
    %c0_1 = arith.constant 0 : index
    %c0_2 = arith.constant 0 : index
    %1 = vector.load %arg3[%c0_1, %c0_2] : memref<32x128xbf16, #tpu.memory_space<vmem>>, vector<32x128xbf16>
    %cst = arith.constant dense<0.000000e+00> : vector<16x128xf32>
    %2 = tpu.matmul %0, %1, %cst {dimension_numbers = #tpu.dot_dimension_numbers<[1], [0], [0], [1], [0, 0, 1, 1], [], []>} : vector<16x32xbf16>, vector<32x128xbf16>, vector<16x128xf32> -> vector<16x128xf32>
    %c0_3 = arith.constant 0 : index
    %c0_4 = arith.constant 0 : index
    %3 = vector.load %arg4[%c0_3, %c0_4] : memref<1x128xf32, #tpu.memory_space<vmem>>, vector<1x128xf32>
    %4 = vector.broadcast %3 : vector<1x128xf32> to vector<16x128xf32>
    %5 = arith.addf %2, %4 : vector<16x128xf32>
    %cst_5 = arith.constant 0.000000e+00 : f32
    %6 = vector.broadcast %cst_5 : f32 to vector<16x128xf32>
    %7 = arith.cmpf ogt, %5, %6 : vector<16x128xf32>
    %cst_6 = arith.constant 0.00999999977 : f32
    %8 = vector.broadcast %cst_6 : f32 to vector<16x128xf32>
    %9 = arith.mulf %8, %5 : vector<16x128xf32>
    %10 = arith.select %7, %5, %9 : vector<16x128xi1>, vector<16x128xf32>
    %c0_7 = arith.constant 0 : index
    %c0_8 = arith.constant 0 : index
    %11 = vector.load %arg5[%c0_7, %c0_8] : memref<16x128xf32, #tpu.memory_space<vmem>>, vector<16x128xf32>
    tpu.vector_store %arg5[%c0_7, %c0_8], %10 {strides = array<i32>} : memref<16x128xf32, #tpu.memory_space<vmem>>, vector<16x128xf32>,
    return
  }
  func.func @transform_0(%arg0: i32, %arg1: i32) -> (i32, i32) {
    %c0_i32 = arith.constant 0 : i32
    %c0_i32_0 = arith.constant 0 : i32
    return %arg0, %c0_i32 : i32, i32
  }
  func.func @transform_1(%arg0: i32, %arg1: i32) -> (i32, i32) {
    %c0_i32 = arith.constant 0 : i32
    %c0_i32_0 = arith.constant 0 : i32
    return %c0_i32, %arg1 : i32, i32
  }
  func.func @transform_2(%arg0: i32, %arg1: i32) -> (i32, i32) {
    %c0_i32 = arith.constant 0 : i32
    %c0_i32_0 = arith.constant 0 : i32
    return %c0_i32, %arg1 : i32, i32
  }
  func.func @transform_3(%arg0: i32, %arg1: i32) -> (i32, i32) {
    %c0_i32 = arith.constant 0 : i32
    return %arg0, %arg1 : i32, i32
  }
}

</mosaic_0001>

<llo_original>
// kernel: tpu_custom_call.1
$region0: #{tpu_custom_call.1}
  #allocation0 [shape = 'u32[]', space=smem, size = 0x4, offset = 0x4, fixed_abs, tag = 'smem constant byte address 0x4 - core index']
  #allocation1 [shape = 'u32[144,128]{1,0:T(1,128)}', space=vmem, size = 0x12000, scoped, tag = 'internal scratch']
  %s0 = inlined_call_operand.hbm [shape: bf16[16,32], index: 0, kind: input, shape index: {}]
  %s1 = inlined_call_operand.hbm [shape: bf16[32,128], index: 1, kind: input, shape index: {}]
  %s2 = inlined_call_operand.vmem [shape: f32[1,128], index: 2, kind: input, shape index: {}]
  %s3 = inlined_call_operand.hbm [shape: f32[16,128], index: 3, kind: output, shape index: {}]
  %s4 = sld [smem:[#allocation0]]
  $region30: #{tpu_custom_call.1} parent=0
    _
  %s6 = ssub.s32 1, %s4
  %s7 = scalar_select 0, %s6, %s4
  $region1: #{tpu_custom_call.1} parent=0
    #allocation2 [shape = 'u8[4096]{0}', space=vmem, size = 0x1000, scoped, tag = 'input window, operand 0, single buffered']
    #allocation3 [shape = 's32[1]{0}', space=sflag, size = 0x4, scoped, tag = 'scoped memory for tpu_custom_call.1']
    #allocation4 [shape = 's32[1]{0}', space=sflag, size = 0x4, scoped, tag = 'scoped memory for tpu_custom_call.1']
    #allocation5 [shape = 'u8[8192]{0}', space=vmem, size = 0x2000, scoped, tag = 'input window, operand 1, single buffered']
    #allocation6 [shape = 's32[1]{0}', space=sflag, size = 0x4, scoped, tag = 'scoped memory for tpu_custom_call.1']
    #allocation7 [shape = 'u8[8192]{0}', space=vmem, size = 0x2000, scoped, tag = 'output window, operand 0, single buffered']
    %8 = vsyncpa [#allocation3], 0
    %9 = vsyncpa [#allocation6], 0
    %10 = vsyncpa [#allocation4], 0
    // Predicated region
    $region2: #{tpu_custom_call.1} parent=1 // pred_check
      _
    $region3: #{tpu_custom_call.1} parent=1 // pred_check_branch
      %12 = sbr.rel (0) target = $region5
    $region4: #{tpu_custom_call.1} parent=1 // pred_region
      %s14 = ssub.s32 128, 128
      %15 = vsyncadd [#allocation3], %s14
      %s16 = sshll.u32 [#allocation2], 4
      %s17 = int_to_ptr.vmem [resolvable:$true] %s16
      %22 = dma.hbm_to_vmem [thread:$0]  %s0, 128, %s17, [#allocation3], 64, 64, 4
    $region5: #{tpu_custom_call.1} parent=1 // pred_fallthru
      _
    // Predicated region
    $region6: #{tpu_custom_call.1} parent=1 // pred_check
      _
    $region7: #{tpu_custom_call.1} parent=1 // pred_check_branch
      %24 = sbr.rel (0) target = $region9
    $region8: #{tpu_custom_call.1} parent=1 // pred_region
      %s26 = ssub.s32 256, 256
      %27 = vsyncadd [#allocation6], %s26
      %s28 = sshll.u32 [#allocation5], 4
      %s29 = int_to_ptr.vmem [resolvable:$true] %s28
      %34 = dma.hbm_to_vmem [thread:$0]  %s1, 256, %s29, [#allocation6], 64, 64, 4
    $region9: #{tpu_custom_call.1} parent=1 // pred_fallthru
      _
    // Predicated region
    $region10: #{tpu_custom_call.1} parent=1 // pred_check
      _
    $region11: #{tpu_custom_call.1} parent=1 // pred_check_branch
      %36 = sbr.rel (0) target = $region13
    $region12: #{tpu_custom_call.1} parent=1 // pred_region
      _
    $region13: #{tpu_custom_call.1} parent=1 // pred_fallthru
      _
    // Predicated region
    $region14: #{tpu_custom_call.1} parent=1 // pred_check
      _
    $region15: #{tpu_custom_call.1} parent=1 // pred_check_branch
      %38 = sbr.rel (0) target = $region17
    $region16: #{tpu_custom_call.1} parent=1 // pred_region
      %39 = dma.done [#allocation3], 128
    $region17: #{tpu_custom_call.1} parent=1 // pred_fallthru
      _
    // Predicated region
    $region18: #{tpu_custom_call.1} parent=1 // pred_check
      _
    $region19: #{tpu_custom_call.1} parent=1 // pred_check_branch
      %41 = sbr.rel (0) target = $region21
    $region20: #{tpu_custom_call.1} parent=1 // pred_region
      %42 = dma.done [#allocation6], 256
    $region21: #{tpu_custom_call.1} parent=1 // pred_fallthru
      _
    %v44 = vld [vmem:[#allocation2] sm:$0xf]
    %v45 = vld [vmem:[#allocation2 + $0x4] sm:$0xf]
    %v46 = vld [vmem:[#allocation5] sm:$0xf]
    %v47 = vld [vmem:[#allocation5 + $0x4] sm:$0xf]
    %v48 = vld [vmem:[#allocation5 + $0x8] sm:$0xf]
    %v49 = vld [vmem:[#allocation5 + $0xc] sm:$0xf]
    %v50 = vld [vmem:[%s2] sm:$0x1]
    %v52 = vlaneseq
    %v53 = vshrl.u32 %v52, 7
    %v54 = vsub.s32 0, %v53
    %v55 = vrot.slane %v50, %v54
    %v59 = vunpack.c.l.b16 %v44
    %v60 = vunpack.c.l.b16 %v45
    %v61 = vpack.c.b16 %v60, %v59
    %v66 = vunpack.c.l.b16 %v46
    %v67 = vunpack.c.l.b16 %v47
    %v68 = vunpack.c.l.b16 %v48
    %v69 = vunpack.c.l.b16 %v49
    %v70 = vpack.c.b16 %v67, %v66
    %v71 = vpack.c.b16 %v69, %v68
    %vm74 = vcmask 261120
    %v76 = vsel %vm74, %v61, 0
    %78 = vmatprep.subr.bf16.mxu0 0
    %79 = vmatpush1.bf16.msra.mxu0 %v70
    %80 = vmatprep.subr.bf16.mxu0 0
    %81 = vmatpush1.bf16.msra.mxu0 %v71
    %82 = vmatprep.subr.bf16.mxu0 0
    %83 = vmatpush1.bf16.msra.mxu0 0
    %84 = vmatprep.subr.bf16.mxu0 0
    %85 = vmatpush1.bf16.msra.mxu0 0
    %86 = vmatprep.subr.bf16.mxu0 0
    %87 = vmatpush1.bf16.msra.mxu0 0
    %88 = vmatprep.subr.bf16.mxu0 0
    %89 = vmatpush1.bf16.msra.mxu0 0
    %90 = vmatprep.subr.bf16.mxu0 0
    %91 = vmatpush1.bf16.msra.mxu0 0
    %92 = vmatprep.subr.bf16.mxu0 0
    %93 = vmatpush1.bf16.msra.mxu0 0
    %94 = vmatprep.subr.bf16.mxu0 0
    %95 = vmatpush1.bf16.msra.mxu0 0
    %96 = vmatprep.subr.bf16.mxu0 0
    %97 = vmatpush1.bf16.msra.mxu0 0
    %98 = vmatprep.subr.bf16.mxu0 0
    %99 = vmatpush1.bf16.msra.mxu0 0
    %100 = vmatprep.subr.bf16.mxu0 0
    %101 = vmatpush1.bf16.msra.mxu0 0
    %102 = vmatprep.subr.bf16.mxu0 0
    %103 = vmatpush1.bf16.msra.mxu0 0
    %104 = vmatprep.subr.bf16.mxu0 0
    %105 = vmatpush1.bf16.msra.mxu0 0
    %106 = vmatprep.subr.bf16.mxu0 0
    %107 = vmatpush1.bf16.msra.mxu0 0
    %108 = vmatprep.subr.bf16.mxu0 0
    %109 = vmatpush1.bf16.msra.mxu0 0
    %110 = vmatprep.mubr.bf16.mxu0 0
    %111 = vmatmul.mubr.bf16.gmra.mrb[0].mxu0 %v76
    %v112 = vpop.f32.mrb[0].mxu0
    %v113 = vadd.f32 %v55, %v112
    %v114 = vpop.f32.mrb[0].mxu0
    %v115 = vpop.f32.mrb[0].mxu0
    %v116 = vadd.f32 %v55, %v115
    %v117 = vpop.f32.mrb[0].mxu0
    %118 = vdwg.mxu0
    %vm119 = vcmp.gt.f32.partialorder %v113, 0.0
    %vm120 = vcmp.gt.f32.partialorder %v116, 0.0
    %v121 = vmul.f32 %v113, 0.01
    %v122 = vmul.f32 %v116, 0.01
    %v123 = vsel %vm119, %v113, %v121
    %v124 = vsel %vm120, %v116, %v122
    %125 = vst [vmem:[#allocation7] sm:$0xff] %v123
    %126 = vst [vmem:[#allocation7 + $0x8] sm:$0xff] %v124
    // Predicated region
    $region22: #{tpu_custom_call.1} parent=1 // pred_check
      _
    $region23: #{tpu_custom_call.1} parent=1 // pred_check_branch
      %128 = sbr.rel (0) target = $region25
    $region24: #{tpu_custom_call.1} parent=1 // pred_region
      %s130 = ssub.s32 256, 256
      %131 = vsyncadd [#allocation4], %s130
      %s132 = sshll.u32 [#allocation7], 4
      %s133 = int_to_ptr.vmem [resolvable:$true] %s132
      %138 = dma.vmem_to_hbm [thread:$0]  %s133, 256, %s3, [#allocation4], 128, 128, 8
    $region25: #{tpu_custom_call.1} parent=1 // pred_fallthru
      _
    // Predicated region
    $region26: #{tpu_custom_call.1} parent=1 // pred_check
      _
    $region27: #{tpu_custom_call.1} parent=1 // pred_check_branch
      %140 = sbr.rel (0) target = $region29
    $region28: #{tpu_custom_call.1} parent=1 // pred_region
      %141 = dma.done [#allocation4], 256
    $region29: #{tpu_custom_call.1} parent=1 // pred_fallthru
      _
    %142 = vsyncpa [#allocation3], 1
    %143 = vsyncpa [#allocation6], 1
    %144 = vsyncpa [#allocation4], 1

</llo_original>
